<compile_context>
chip_gen: v5e
topology: v5e:2x2
jax: 0.10.0
libtpu: 0.0.40
codegen_flags: <defaults>
</compile_context>

<pallas_src>
import functools

import jax
import jax.numpy as jnp
from jax import lax
from jax.experimental import pallas as pl
from jax.experimental.pallas import tpu as pltpu


# "lowbias32" style avalanche hash on int32 bits (logical shifts, wrapping
# multiplies).  Constants written as signed int32.
_MUL1 = 0x7FEB352D            # 2146121005  (fits int32)
_MUL2 = -2073254261           # == int32(0x846CA68B)
_GOLDEN = -1640531527         # == int32(0x9E3779B9)


def _hash32(x):
    x = x ^ lax.shift_right_logical(x, 16)
    x = x * jnp.int32(_MUL1)
    x = x ^ lax.shift_right_logical(x, 15)
    x = x * jnp.int32(_MUL2)
    x = x ^ lax.shift_right_logical(x, 16)
    return x


def _word_dropout_kernel(seed_ref, tok_ref, out_ref, *,
                         threshold, oov_token, exclude_tokens, n_cols):
    toks = tok_ref[...]                                    # (bR, bC) int32 block
    shape = toks.shape
    row0 = pl.program_id(0) * shape[0]
    col0 = pl.program_id(1) * shape[1]
    rows = lax.broadcasted_iota(jnp.int32, shape, 0) + row0
    cols = lax.broadcasted_iota(jnp.int32, shape, 1) + col0
    counter = rows * jnp.int32(n_cols) + cols              # global element id

    seed = seed_ref[0]                                     # SMEM scalar
    h = _hash32(counter ^ (seed * jnp.int32(_GOLDEN)))

    # keep/drop decision entirely in the integer domain (24-bit uniform)
    drop = (h & jnp.int32(0x00FFFFFF)) < jnp.int32(threshold)

    not_pad = jnp.full(shape, True, dtype=jnp.bool_)
    for pad in exclude_tokens:                             # static python loop
        not_pad = not_pad & (toks != jnp.asarray(pad, toks.dtype))

    oov = jnp.full(shape, oov_token, dtype=toks.dtype)
    out_ref[...] = jnp.where(drop & not_pad, oov, toks)


def word_dropout(tokens, *, p, oov_token, exclude_tokens=None, seed=0,
                 training=True, max_block_rows=256, max_block_cols=2048):
    """JAX/Pallas equivalent of elit WordDropout.forward / token_dropout."""
    if not training or p <= 0.0:
        return tokens
    if not exclude_tokens:
        exclude_tokens = [0]
    exclude_tokens = tuple(int(t) for t in exclude_tokens)

    orig_shape = tokens.shape
    if tokens.ndim == 1:
        tok2d = tokens.reshape(1, -1)
    elif tokens.ndim == 2:
        tok2d = tokens
    else:
        tok2d = tokens.reshape(-1, orig_shape[-1])

    R, C = tok2d.shape
    # Full-dim blocks are always legal; otherwise use aligned tiles
    # (multiples of 8 / 128) and let pl.cdiv handle ragged edges.
    block_rows = R if R <= max_block_rows else max_block_rows      # 256: mult of 8
    block_cols = C if C <= max_block_cols else max_block_cols      # 2048: mult of 128
    grid = (pl.cdiv(R, block_rows), pl.cdiv(C, block_cols))

    # p >= 1.0 saturates the threshold -> every eligible token is dropped.
    threshold = min(int(float(p) * (1 << 24)), 1 << 24)

    kernel = functools.partial(
        _word_dropout_kernel,
        threshold=threshold,
        oov_token=int(oov_token),
        exclude_tokens=exclude_tokens,
        n_cols=C,
    )
    seed_arr = jnp.asarray([seed], dtype=jnp.int32)
    itemsize = tok2d.dtype.itemsize

    out2d = pl.pallas_call(
        kernel,
        out_shape=jax.ShapeDtypeStruct((R, C), tok2d.dtype),
        grid_spec=pltpu.PrefetchScalarGridSpec(
            num_scalar_prefetch=1,
            grid=grid,
            in_specs=[pl.BlockSpec((block_rows, block_cols),
                                   lambda i, j, seed: (i, j))],
            out_specs=pl.BlockSpec((block_rows, block_cols),
                                   lambda i, j, seed: (i, j)),
        ),
        compiler_params=pltpu.CompilerParams(
            dimension_semantics=("parallel", "parallel"),
            vmem_limit_bytes=32 * 1024 * 1024),
        cost_estimate=pl.CostEstimate(
            flops=10 * R * C,
            transcendentals=0,
            bytes_accessed=2 * R * C * itemsize),
    )(seed_arr, tok2d)

    return out2d.reshape(orig_shape)


if __name__ == "__main__":
    key = jax.random.PRNGKey(0)
    k1, k2 = jax.random.split(key)

    p = 0.25
    oov = 1
    exclude = [0]

    # ---- small batch: (B, T) with 0-padding at the end of each sentence ----
    B, T = 4, 16
    toks = jax.random.randint(k1, (B, T), 2, 100, dtype=jnp.int32)
    lengths = jnp.array([16, 12, 9, 5], dtype=jnp.int32)
    pos = jnp.arange(T)[None, :]
    toks = jnp.where(pos < lengths[:, None], toks, 0)

    out = word_dropout(toks, p=p, oov_token=oov, exclude_tokens=exclude,
                       seed=1234, training=True)
    out = jax.block_until_ready(out)
    assert out.shape == toks.shape and out.dtype == toks.dtype
    changed = out != toks
    # every changed element must be exactly the oov token
    assert bool(jnp.all(jnp.where(changed, out == oov, True)))
    # padding tokens are never modified
    assert bool(jnp.all(jnp.where(toks == 0, out == toks, True)))

    # determinism: same seed -> same result
    out_again = jax.block_until_ready(
        word_dropout(toks, p=p, oov_token=oov, exclude_tokens=exclude,
                     seed=1234, training=True))
    assert bool(jnp.all(out == out_again))

    # eval-mode / p=0 passthrough
    assert bool(jnp.all(word_dropout(toks, p=p, oov_token=oov,
                                     training=False) == toks))
    assert bool(jnp.all(word_dropout(toks, p=0.0, oov_token=oov,
                                     training=True) == toks))

    # p = 1.0: every non-padding token -> oov, padding untouched (no inf/NaN)
    out_all = jax.block_until_ready(
        word_dropout(toks, p=1.0, oov_token=oov, exclude_tokens=exclude,
                     seed=7, training=True))
    assert bool(jnp.all(jnp.where(toks != 0, out_all == oov, out_all == toks)))

    # ---- slightly larger input exercising the multi-block grid ----
    toks_big = jax.random.randint(k2, (16, 4096), 2, 5000, dtype=jnp.int32)
    out_big = jax.block_until_ready(
        word_dropout(toks_big, p=p, oov_token=oov, exclude_tokens=exclude,
                     seed=99, training=True))
    changed_big = out_big != toks_big
    assert bool(jnp.all(jnp.where(changed_big, out_big == oov, True)))
    frac = float(jnp.mean(changed_big.astype(jnp.float32)))
    assert 0.15 < frac < 0.35, f"empirical drop rate {frac} far from p={p}"

    print("KERNEL_OK")
</pallas_src>

<mosaic_0001>
module attributes {stable_mosaic.version = 11 : i64} {
  func.func @_word_dropout_kernel(%arg0: i32, %arg1: i32, %arg2: memref<1xi32, #tpu.memory_space<smem>>, %arg3: memref<4x16xi32, #tpu.memory_space<vmem>>, %arg4: memref<4x16xi32, #tpu.memory_space<vmem>>) attributes {dimension_semantics = [#tpu.dimension_semantics<parallel>, #tpu.dimension_semantics<parallel>], iteration_bounds = array<i64: 1, 1>, scalar_prefetch = 1 : i64, scratch_operands = 0 : i64, tpu.core_type = #tpu.core_type<tc>, window_params = [{transform_indices = @transform_0, window_bounds = array<i64: 4, 16>}, {transform_indices = @transform_1, window_bounds = array<i64: 4, 16>}]} {
    %c0 = arith.constant 0 : index
    %c0_0 = arith.constant 0 : index
    %0 = vector.load %arg3[%c0, %c0_0] : memref<4x16xi32, #tpu.memory_space<vmem>>, vector<4x16xi32>
    %c4_i32 = arith.constant 4 : i32
    %1 = arith.muli %arg0, %c4_i32 : i32
    %c16_i32 = arith.constant 16 : i32
    %2 = arith.muli %arg1, %c16_i32 : i32
    %3 = tpu.iota {dimensions = array<i32: 0>} : vector<4x16xi32>
    %4 = vector.broadcast %1 : i32 to vector<4x16xi32>
    %5 = arith.addi %3, %4 : vector<4x16xi32>
    %6 = tpu.iota {dimensions = array<i32: 1>} : vector<4x16xi32>
    %7 = vector.broadcast %2 : i32 to vector<4x16xi32>
    %8 = arith.addi %6, %7 : vector<4x16xi32>
    %c16_i32_1 = arith.constant 16 : i32
    %9 = vector.broadcast %c16_i32_1 : i32 to vector<4x16xi32>
    %10 = arith.muli %5, %9 : vector<4x16xi32>
    %11 = arith.addi %10, %8 : vector<4x16xi32>
    %c0_2 = arith.constant 0 : index
    %12 = memref.load %arg2[%c0_2] : memref<1xi32, #tpu.memory_space<smem>>
    %c-1640531527_i32 = arith.constant -1640531527 : i32
    %13 = arith.muli %12, %c-1640531527_i32 : i32
    %14 = vector.broadcast %13 : i32 to vector<4x16xi32>
    %15 = arith.xori %11, %14 : vector<4x16xi32>
    %c16_i32_3 = arith.constant 16 : i32
    %16 = vector.broadcast %c16_i32_3 : i32 to vector<4x16xi32>
    %17 = arith.shrui %15, %16 : vector<4x16xi32>
    %18 = arith.xori %15, %17 : vector<4x16xi32>
    %c2146121005_i32 = arith.constant 2146121005 : i32
    %19 = vector.broadcast %c2146121005_i32 : i32 to vector<4x16xi32>
    %20 = arith.muli %18, %19 : vector<4x16xi32>
    %c15_i32 = arith.constant 15 : i32
    %21 = vector.broadcast %c15_i32 : i32 to vector<4x16xi32>
    %22 = arith.shrui %20, %21 : vector<4x16xi32>
    %23 = arith.xori %20, %22 : vector<4x16xi32>
    %c-2073254261_i32 = arith.constant -2073254261 : i32
    %24 = vector.broadcast %c-2073254261_i32 : i32 to vector<4x16xi32>
    %25 = arith.muli %23, %24 : vector<4x16xi32>
    %c16_i32_4 = arith.constant 16 : i32
    %26 = vector.broadcast %c16_i32_4 : i32 to vector<4x16xi32>
    %27 = arith.shrui %25, %26 : vector<4x16xi32>
    %28 = arith.xori %25, %27 : vector<4x16xi32>
    %c16777215_i32 = arith.constant 16777215 : i32
    %29 = vector.broadcast %c16777215_i32 : i32 to vector<4x16xi32>
    %30 = arith.andi %28, %29 : vector<4x16xi32>
    %c4194304_i32 = arith.constant 4194304 : i32
    %31 = vector.broadcast %c4194304_i32 : i32 to vector<4x16xi32>
    %32 = arith.cmpi slt, %30, %31 : vector<4x16xi32>
    %true = arith.constant true
    %33 = vector.broadcast %true : i1 to vector<4x16xi1>
    %c0_i32 = arith.constant 0 : i32
    %34 = vector.broadcast %c0_i32 : i32 to vector<4x16xi32>
    %35 = arith.cmpi ne, %0, %34 : vector<4x16xi32>
    %36 = arith.andi %33, %35 : vector<4x16xi1>
    %c1_i32 = arith.constant 1 : i32
    %37 = vector.broadcast %c1_i32 : i32 to vector<4x16xi32>
    %38 = arith.andi %32, %36 : vector<4x16xi1>
    %39 = arith.select %38, %37, %0 : vector<4x16xi1>, vector<4x16xi32>
    %c0_5 = arith.constant 0 : index
    %c0_6 = arith.constant 0 : index
    %40 = vector.load %arg4[%c0_5, %c0_6] : memref<4x16xi32, #tpu.memory_space<vmem>>, vector<4x16xi32>
    tpu.vector_store %arg4[%c0_5, %c0_6], %39 {strides = array<i32>} : memref<4x16xi32, #tpu.memory_space<vmem>>, vector<4x16xi32>,
    return
  }
  func.func @transform_0(%arg0: i32, %arg1: i32, %arg2: memref<1xi32, #tpu.memory_space<smem>>) -> (i32, i32) {
    %c0_i32 = arith.constant 0 : i32
    return %arg0, %arg1 : i32, i32
  }
  func.func @transform_1(%arg0: i32, %arg1: i32, %arg2: memref<1xi32, #tpu.memory_space<smem>>) -> (i32, i32) {
    %c0_i32 = arith.constant 0 : i32
    return %arg0, %arg1 : i32, i32
  }
}

</mosaic_0001>

<llo_original>
// kernel: tpu_custom_call.1
$region0: #{tpu_custom_call.1}
  #allocation0 [shape = 'u32[]', space=smem, size = 0x4, offset = 0x4, fixed_abs, tag = 'smem constant byte address 0x4 - core index']
  #allocation1 [shape = 'u32[72,128]{1,0:T(1,128)}', space=vmem, size = 0x9000, scoped, tag = 'internal scratch']
  #allocation2 [shape = 's32[1]{0}', space=sflag, size = 0x4, scoped, tag = 'scoped memory for tpu_custom_call.1']
  #allocation3 [shape = 's32[1]{0:T(128)S(6)}', space=smem, size = 0x200, scoped, tag = 'prefetched SMEM operand 0']
  %s0 = inlined_call_operand.<no memory space> [shape: s32[1], index: 0, kind: input, shape index: {}]
  %s1 = inlined_call_operand.hbm [shape: s32[4,16], index: 1, kind: input, shape index: {}]
  %s2 = inlined_call_operand.hbm [shape: s32[4,16], index: 2, kind: output, shape index: {}]
  %s3 = sld [smem:[#allocation0]]
  $region18: #{tpu_custom_call.1} parent=0
    _
  %s5 = ssub.s32 1, %s3
  %s6 = scalar_select 0, %s5, %s3
  %7 = sst [smem:[#allocation3]] %s0
  $region1: #{tpu_custom_call.1} parent=0
    #allocation4 [shape = 'u8[2048]{0}', space=vmem, size = 0x800, scoped, tag = 'input window, operand 1, single buffered']
    #allocation5 [shape = 's32[1]{0}', space=sflag, size = 0x4, scoped, tag = 'scoped memory for tpu_custom_call.1']
    #allocation6 [shape = 's32[1]{0}', space=sflag, size = 0x4, scoped, tag = 'scoped memory for tpu_custom_call.1']
    #allocation7 [shape = 'u8[2048]{0}', space=vmem, size = 0x800, scoped, tag = 'output window, operand 0, single buffered']
    %8 = vsyncpa [#allocation5], 0
    %9 = vsyncpa [#allocation6], 0
    // Predicated region
    $region2: #{tpu_custom_call.1} parent=1 // pred_check
      _
    $region3: #{tpu_custom_call.1} parent=1 // pred_check_branch
      %11 = sbr.rel (0) target = $region5
    $region4: #{tpu_custom_call.1} parent=1 // pred_region
      %13 = vsyncadd [#allocation5], 0
      %s15 = sshll.u32 %s1, 4
      %s16 = int_to_ptr.hbm [resolvable:$true] %s15
      %s17 = sshll.u32 [#allocation4], 4
      %s18 = int_to_ptr.vmem [resolvable:$true] %s17
      %20 = dma.hbm_to_vmem [thread:$0]  %s16, 64, %s18, [#allocation5]
    $region5: #{tpu_custom_call.1} parent=1 // pred_fallthru
      _
    // Predicated region
    $region6: #{tpu_custom_call.1} parent=1 // pred_check
      _
    $region7: #{tpu_custom_call.1} parent=1 // pred_check_branch
      %22 = sbr.rel (0) target = $region9
    $region8: #{tpu_custom_call.1} parent=1 // pred_region
      %24 = dma.done [#allocation5], 64
    $region9: #{tpu_custom_call.1} parent=1 // pred_fallthru
      _
    %v25 = vld [vmem:[#allocation4] sm:$0xf]
    %s26 = smul.u32 0, 4
    %s27 = smul.u32 0, 16
    %v28 = vlaneseq
    %v29 = vshrl.u32 %v28, 7
    %v30 = vstv %s26
    %v31 = vadd.s32 %v29, %v30
    %v32 = vlaneseq
    %v33 = vand.u32 %v32, 127
    %v34 = vstv %s27
    %v35 = vadd.s32 %v33, %v34
    %v36 = vmul.u32 %v31, 16
    %v37 = vadd.s32 %v36, %v35
    %s38 = sld [smem:[#allocation3]]
    %s39 = smul.u32 %s38, 2654435769
    %v40 = vstv %s39
    %v41 = vxor.u32 %v37, %v40
    %v42 = vshrl.u32 %v41, 16
    %v43 = vxor.u32 %v41, %v42
    %v44 = vmul.u32 %v43, 2146121005
    %v45 = vshrl.u32 %v44, 15
    %v46 = vxor.u32 %v44, %v45
    %v47 = vmul.u32 %v46, 2221713035
    %v48 = vshrl.u32 %v47, 16
    %v49 = vxor.u32 %v47, %v48
    %v50 = vand.u32 %v49, 16777215
    %vm51 = vcmp.lt.s32.totalorder %v50, 4194304
    %vm52 = vcmp.ne.s32.totalorder %v25, 0
    %vm53 = vmand %vm51, %vm52
    %v54 = vsel %vm53, 1, %v25
    %vm55 = vcmask 125952
    %56 = vst.msk [vmem:[#allocation7] sm:$0xf] %vm55, %v54
    // Predicated region
    $region10: #{tpu_custom_call.1} parent=1 // pred_check
      _
    $region11: #{tpu_custom_call.1} parent=1 // pred_check_branch
      %58 = sbr.rel (0) target = $region13
    $region12: #{tpu_custom_call.1} parent=1 // pred_region
      %60 = vsyncadd [#allocation6], 0
      %s62 = sshll.u32 [#allocation7], 4
      %s63 = int_to_ptr.vmem [resolvable:$true] %s62
      %s64 = sshll.u32 %s2, 4
      %s65 = int_to_ptr.hbm [resolvable:$true] %s64
      %67 = dma.vmem_to_hbm [thread:$0]  %s63, 64, %s65, [#allocation6]
    $region13: #{tpu_custom_call.1} parent=1 // pred_fallthru
      _
    // Predicated region
    $region14: #{tpu_custom_call.1} parent=1 // pred_check
      _
    $region15: #{tpu_custom_call.1} parent=1 // pred_check_branch
      %69 = sbr.rel (0) target = $region17
    $region16: #{tpu_custom_call.1} parent=1 // pred_region
      %71 = dma.done [#allocation6], 64
    $region17: #{tpu_custom_call.1} parent=1 // pred_fallthru
      _
    %72 = vsyncpa [#allocation5], 1
    %73 = vsyncpa [#allocation6], 1

</llo_original>
